<compile_context>
chip_gen: v7x
topology: tpu7x:2x2x1
jax: 0.10.0
libtpu: 0.0.40
codegen_flags: <defaults>
</compile_context>

<pallas_src>
import functools

import jax
import jax.numpy as jnp
from jax.experimental import pallas as pl
from jax.experimental.pallas import tpu as pltpu

EPS = 1e-5
_VMEM_LIMIT = 32 * 1024 * 1024   # explicit scoped-VMEM budget (safe on v5e/v6e/v7x)


# ----------------------------------------------------------------------------
# Standalone per-channel sum / sum-of-squares reduction (only for the network
# input, whose BN has no producing Pallas kernel to fuse into).
# ----------------------------------------------------------------------------
def _stats_kernel(x_ref, sum_ref, sq_ref):
    @pl.when(pl.program_id(0) == 0)
    def _():
        sum_ref[...] = jnp.zeros_like(sum_ref)
        sq_ref[...] = jnp.zeros_like(sq_ref)

    x = x_ref[0].astype(jnp.float32)           # (H, W, C)
    h, w, c = x.shape
    x2 = x.reshape(h * w, c)
    sum_ref[...] += jnp.sum(x2, axis=0)[None, :]
    sq_ref[...] += jnp.sum(x2 * x2, axis=0)[None, :]


def channel_sums(x):
    n, h, w, c = x.shape
    s, sq = pl.pallas_call(
        _stats_kernel,
        out_shape=(jax.ShapeDtypeStruct((1, c), jnp.float32),
                   jax.ShapeDtypeStruct((1, c), jnp.float32)),
        grid_spec=pltpu.PrefetchScalarGridSpec(
            num_scalar_prefetch=0,
            grid=(n,),
            in_specs=[pl.BlockSpec((1, h, w, c), lambda i: (i, 0, 0, 0))],
            out_specs=(pl.BlockSpec((1, c), lambda i: (0, 0)),
                       pl.BlockSpec((1, c), lambda i: (0, 0)))),
        compiler_params=pltpu.CompilerParams(
            dimension_semantics=("arbitrary",),
            vmem_limit_bytes=_VMEM_LIMIT),
    )(x)
    return s[0], sq[0]


def _bn_scale_shift(s, sq, count, gamma, beta, eps=EPS):
    """Fold training-mode BatchNorm2d into per-channel (scale, shift)."""
    mean = s / count
    # TODO(synk): E[x^2]-E[x]^2 can cancel for large-mean activations; a
    # centered two-pass would be more robust but costs an extra HBM read.
    var = jnp.maximum(sq / count - mean * mean, 0.0)     # biased variance
    scale = gamma / jnp.sqrt(var + eps)
    shift = beta - mean * scale
    return scale, shift


# ----------------------------------------------------------------------------
# Head kernel: reads the space-to-depth input z once and produces
#   x2 = line2 (raw 1x1 stride-2 conv)          -- one matmul, no BN
#   t  = line1 conv-a (BN1+ReLU -> 5x5 s2 conv) -- as a stride-1 3x3 im2col
# plus the fused BN2 batch statistics of t.
# ----------------------------------------------------------------------------
def _head_kernel(z_ref, sc_ref, sh_ref, w3_ref, b3_ref, w2_ref, b2_ref,
                 t_ref, x2_ref, sum_ref, sq_ref, xp_ref, *, K, pad):
    @pl.when(pl.program_id(0) == 0)
    def _():
        sum_ref[...] = jnp.zeros_like(sum_ref)
        sq_ref[...] = jnp.zeros_like(sq_ref)

    z = z_ref[0].astype(jnp.float32)            # (Hh, Wh, C4)
    Hh, Wh, C4 = z.shape
    Cout = t_ref.shape[-1]

    # ---- line2: 1x1 stride-2 conv == 1x1 conv on phase-(0,0) channels of z,
    # done as a single matmul against a zero-padded (C4, Cout) weight.
    x2 = jnp.dot(z.reshape(Hh * Wh, C4), w2_ref[...],
                 preferred_element_type=jnp.float32) + b2_ref[0]
    x2_ref[0] = x2.reshape(Hh, Wh, Cout).astype(x2_ref.dtype)

    # ---- line1 conv-a: BN1 affine + ReLU, halo-only zero pad, im2col matmul.
    y = jnp.maximum(z * sc_ref[0] + sh_ref[0], 0.0)
    Hp, Wp = Hh + 2 * pad, Wh + 2 * pad
    xp_ref[:pad, :, :] = jnp.zeros((pad, Wp, C4), jnp.float32)
    xp_ref[Hp - pad:, :, :] = jnp.zeros((pad, Wp, C4), jnp.float32)
    xp_ref[:, :pad, :] = jnp.zeros((Hp, pad, C4), jnp.float32)
    xp_ref[:, Wp - pad:, :] = jnp.zeros((Hp, pad, C4), jnp.float32)
    xp_ref[pad:pad + Hh, pad:pad + Wh, :] = y
    xp = xp_ref[...]

    cols = [xp[kh:kh + Hh, kw:kw + Wh, :] for kh in range(K) for kw in range(K)]
    patches = jnp.concatenate(cols, axis=-1)              # (Hh, Wh, K*K*C4)
    acc = jnp.dot(patches.reshape(Hh * Wh, K * K * C4), w3_ref[...],
                  preferred_element_type=jnp.float32)     # (Hh*Wh, Cout)
    t = acc + b3_ref[0]
    t_ref[0] = t.reshape(Hh, Wh, Cout).astype(t_ref.dtype)

    # ---- fused BN2 batch statistics of t (saves a full HBM re-read pass).
    sum_ref[...] += jnp.sum(t, axis=0)[None, :]
    sq_ref[...] += jnp.sum(t * t, axis=0)[None, :]


def head_convs(z, scale1_4, shift1_4, w3, b3, w2z, b2):
    N, Hh, Wh, C4 = z.shape
    Cout = w3.shape[-1]
    K, pad = 3, 1
    w3_flat = w3.reshape(K * K * C4, Cout)
    kernel = functools.partial(_head_kernel, K=K, pad=pad)
    t, x2, s, sq = pl.pallas_call(
        kernel,
        out_shape=(jax.ShapeDtypeStruct((N, Hh, Wh, Cout), jnp.float32),
                   jax.ShapeDtypeStruct((N, Hh, Wh, Cout), jnp.float32),
                   jax.ShapeDtypeStruct((1, Cout), jnp.float32),
                   jax.ShapeDtypeStruct((1, Cout), jnp.float32)),
        grid_spec=pltpu.PrefetchScalarGridSpec(
            num_scalar_prefetch=0,
            grid=(N,),
            in_specs=[
                pl.BlockSpec((1, Hh, Wh, C4), lambda n: (n, 0, 0, 0)),
                pl.BlockSpec((1, C4), lambda n: (0, 0)),
                pl.BlockSpec((1, C4), lambda n: (0, 0)),
                pl.BlockSpec((K * K * C4, Cout), lambda n: (0, 0)),
                pl.BlockSpec((1, Cout), lambda n: (0, 0)),
                pl.BlockSpec((C4, Cout), lambda n: (0, 0)),
                pl.BlockSpec((1, Cout), lambda n: (0, 0)),
            ],
            out_specs=(
                pl.BlockSpec((1, Hh, Wh, Cout), lambda n: (n, 0, 0, 0)),
                pl.BlockSpec((1, Hh, Wh, Cout), lambda n: (n, 0, 0, 0)),
                pl.BlockSpec((1, Cout), lambda n: (0, 0)),
                pl.BlockSpec((1, Cout), lambda n: (0, 0)),
            ),
            scratch_shapes=[pltpu.VMEM((Hh + 2 * pad, Wh + 2 * pad, C4),
                                       jnp.float32)]),
        compiler_params=pltpu.CompilerParams(
            dimension_semantics=("arbitrary",),     # stats accumulate across n
            vmem_limit_bytes=_VMEM_LIMIT),
    )(z, scale1_4.reshape(1, C4), shift1_4.reshape(1, C4), w3_flat,
      b3.reshape(1, Cout), w2z, b2.reshape(1, Cout))
    return t, x2, s[0], sq[0]


# ----------------------------------------------------------------------------
# Generic fused kernel: BN affine (+ReLU) -> [halo pad] -> im2col KxK conv
# (single matmul) -> bias (+ optional residual) -> [fused batch stats].
# ----------------------------------------------------------------------------
def _bnrelu_conv_kernel(x_ref, sc_ref, sh_ref, w_ref, b_ref, *rest,
                        K, pad, has_residual, want_stats):
    refs = list(rest)
    res_ref = refs.pop(0) if has_residual else None
    o_ref = refs.pop(0)
    if want_stats:
        sum_ref = refs.pop(0)
        sq_ref = refs.pop(0)
    xp_ref = refs.pop(0) if pad > 0 else None

    if want_stats:
        @pl.when(pl.program_id(0) == 0)
        def _():
            sum_ref[...] = jnp.zeros_like(sum_ref)
            sq_ref[...] = jnp.zeros_like(sq_ref)

    x = x_ref[0].astype(jnp.float32)            # (H, W, Cin)
    H, W, Cin = x.shape
    Ho, Wo, Cout = o_ref.shape[1], o_ref.shape[2], o_ref.shape[3]

    y = jnp.maximum(x * sc_ref[0] + sh_ref[0], 0.0)

    if K == 1:
        # 1x1 conv: feed the BN result straight into the MXU (no scratch).
        patches2 = y.reshape(Ho * Wo, Cin)
        depth = Cin
    else:
        # Zero only the halo ring; interior is overwritten below.
        Hp, Wp = H + 2 * pad, W + 2 * pad
        xp_ref[:pad, :, :] = jnp.zeros((pad, Wp, Cin), jnp.float32)
        xp_ref[Hp - pad:, :, :] = jnp.zeros((pad, Wp, Cin), jnp.float32)
        xp_ref[:, :pad, :] = jnp.zeros((Hp, pad, Cin), jnp.float32)
        xp_ref[:, Wp - pad:, :] = jnp.zeros((Hp, pad, Cin), jnp.float32)
        xp_ref[pad:pad + H, pad:pad + W, :] = y
        xp = xp_ref[...]
        cols = [xp[kh:kh + Ho, kw:kw + Wo, :]
                for kh in range(K) for kw in range(K)]
        patches = jnp.concatenate(cols, axis=-1)           # (Ho, Wo, K*K*Cin)
        depth = K * K * Cin
        patches2 = patches.reshape(Ho * Wo, depth)

    acc = jnp.dot(patches2, w_ref[...], preferred_element_type=jnp.float32)
    out = acc + b_ref[0]
    if has_residual:
        out = out + res_ref[0].astype(jnp.float32).reshape(Ho * Wo, Cout)
    o_ref[0] = out.reshape(Ho, Wo, Cout).astype(o_ref.dtype)

    if want_stats:
        sum_ref[...] += jnp.sum(out, axis=0)[None, :]
        sq_ref[...] += jnp.sum(out * out, axis=0)[None, :]


def bnrelu_conv(x, scale, shift, w, b, *, K, pad, residual=None,
                want_stats=False):
    """x: (N,H,W,Cin), w: (K,K,Cin,Cout) HWIO, b: (Cout,). Stride-1 conv."""
    N, H, W, Cin = x.shape
    Cout = w.shape[-1]
    Ho, Wo = H + 2 * pad - K + 1, W + 2 * pad - K + 1
    w_flat = w.reshape(K * K * Cin, Cout)

    in_specs = [
        pl.BlockSpec((1, H, W, Cin), lambda n: (n, 0, 0, 0)),
        pl.BlockSpec((1, Cin), lambda n: (0, 0)),
        pl.BlockSpec((1, Cin), lambda n: (0, 0)),
        pl.BlockSpec((K * K * Cin, Cout), lambda n: (0, 0)),
        pl.BlockSpec((1, Cout), lambda n: (0, 0)),
    ]
    args = [x, scale.reshape(1, Cin), shift.reshape(1, Cin), w_flat,
            b.reshape(1, Cout)]
    if residual is not None:
        in_specs.append(pl.BlockSpec((1, Ho, Wo, Cout), lambda n: (n, 0, 0, 0)))
        args.append(residual)

    if want_stats:
        out_shape = (jax.ShapeDtypeStruct((N, Ho, Wo, Cout), jnp.float32),
                     jax.ShapeDtypeStruct((1, Cout), jnp.float32),
                     jax.ShapeDtypeStruct((1, Cout), jnp.float32))
        out_specs = (pl.BlockSpec((1, Ho, Wo, Cout), lambda n: (n, 0, 0, 0)),
                     pl.BlockSpec((1, Cout), lambda n: (0, 0)),
                     pl.BlockSpec((1, Cout), lambda n: (0, 0)))
        semantics = ("arbitrary",)      # stats accumulate across the batch axis
    else:
        out_shape = jax.ShapeDtypeStruct((N, Ho, Wo, Cout), jnp.float32)
        out_specs = pl.BlockSpec((1, Ho, Wo, Cout), lambda n: (n, 0, 0, 0))
        semantics = ("parallel",)       # megacore-splittable on v7x

    scratch = []
    if pad > 0:
        scratch.append(pltpu.VMEM((H + 2 * pad, W + 2 * pad, Cin), jnp.float32))

    kernel = functools.partial(_bnrelu_conv_kernel, K=K, pad=pad,
                               has_residual=residual is not None,
                               want_stats=want_stats)

    res = pl.pallas_call(
        kernel,
        out_shape=out_shape,
        grid_spec=pltpu.PrefetchScalarGridSpec(
            num_scalar_prefetch=0,
            grid=(N,),
            in_specs=in_specs,
            out_specs=out_specs,
            scratch_shapes=scratch),
        compiler_params=pltpu.CompilerParams(
            dimension_semantics=semantics,
            vmem_limit_bytes=_VMEM_LIMIT),
    )(*args)

    if want_stats:
        o, s, sq = res
        return o, s[0], sq[0]
    return res


# ----------------------------------------------------------------------------
# ResDown forward
# ----------------------------------------------------------------------------
def res_down_forward(x_nchw, p):
    x = jnp.transpose(x_nchw, (0, 2, 3, 1)).astype(jnp.float32)   # NCHW -> NHWC
    N, H, W, Cin = x.shape
    Hh, Wh = H // 2, W // 2
    Cout = p["w_l1a"].shape[-1]

    # Space-to-depth by 2 (glue): both stride-2 convs become stride-1.
    # Channel order of z is (ph, pw, ci).
    z = x.reshape(N, Hh, 2, Wh, 2, Cin).transpose(0, 1, 3, 2, 4, 5)
    z = z.reshape(N, Hh, Wh, 4 * Cin)

    # BN1 statistics of x, computed from z (same elements, single HBM pass).
    s4, sq4 = channel_sums(z)
    s1 = s4.reshape(4, Cin).sum(axis=0)
    sq1 = sq4.reshape(4, Cin).sum(axis=0)
    scale1, shift1 = _bn_scale_shift(s1, sq1, float(N * H * W),
                                     p["g1"], p["bt1"])
    scale1_4 = jnp.tile(scale1, 4)
    shift1_4 = jnp.tile(shift1, 4)

    # 5x5/s2 weights -> equivalent stride-1 3x3 weights over the s2d channels.
    w5 = p["w_l1a"]                                        # (5,5,Cin,Cout)
    w5p = jnp.pad(w5, ((0, 1), (0, 1), (0, 0), (0, 0)))    # (6,6,Cin,Cout)
    w3 = w5p.reshape(3, 2, 3, 2, Cin, Cout).transpose(0, 2, 1, 3, 4, 5)
    w3 = w3.reshape(3, 3, 4 * Cin, Cout)

    # 1x1/s2 (line2) == 1x1 conv on the phase-(0,0) channels of z.
    w2 = p["w_l2"].reshape(Cin, Cout)
    w2z = jnp.concatenate([w2, jnp.zeros((3 * Cin, Cout), w2.dtype)], axis=0)

    # Fused head: x2 (line2) + t (line1 conv-a) + BN2 stats of t.
    t, x2, st, sqt = head_convs(z, scale1_4, shift1_4, w3, p["b_l1a"],
                                w2z, p["b_l2"])

    cnt_h = float(N * Hh * Wh)
    scale2, shift2 = _bn_scale_shift(st, sqt, cnt_h, p["g2"], p["bt2"])

    # line1 conv-b (1x1) + residual x2 -> x3, with fused BN3 stats.
    x3, s3, sq3 = bnrelu_conv(t, scale2, shift2, p["w_l1b"], p["b_l1b"],
                              K=1, pad=0, residual=x2, want_stats=True)
    scale3, shift3 = _bn_scale_shift(s3, sq3, cnt_h, p["g3"], p["bt3"])

    # line3 conv-a (3x3 same) -> u, with fused BN4 stats.
    u, su, squ = bnrelu_conv(x3, scale3, shift3, p["w_l3a"], p["b_l3a"],
                             K=3, pad=1, want_stats=True)
    scale4, shift4 = _bn_scale_shift(su, squ, cnt_h, p["g4"], p["bt4"])

    # line3 conv-b (3x3 same) + residual x3 -> output.
    out = bnrelu_conv(u, scale4, shift4, p["w_l3b"], p["b_l3b"],
                      K=3, pad=1, residual=x3, want_stats=False)

    return jnp.transpose(out, (0, 3, 1, 2))                # NHWC -> NCHW


# ----------------------------------------------------------------------------
# Deterministic parameter init (shapes follow the PyTorch module __init__)
# ----------------------------------------------------------------------------
def init_params(key, n_in, n_out):
    ks = jax.random.split(key, 18)

    def conv_w(k, kk, cin, cout):
        w = 0.1 * jax.random.normal(k, (cout, cin, kk, kk), jnp.float32)
        return jnp.transpose(w, (2, 3, 1, 0))              # OIHW -> HWIO

    def bias(k, c):
        return 0.05 * jax.random.normal(k, (c,), jnp.float32)

    def gamma(k, c):
        return 1.0 + 0.1 * jax.random.normal(k, (c,), jnp.float32)

    def beta(k, c):
        return 0.1 * jax.random.normal(k, (c,), jnp.float32)

    return dict(
        # line1
        g1=gamma(ks[0], n_in), bt1=beta(ks[1], n_in),
        w_l1a=conv_w(ks[2], 5, n_in, n_out), b_l1a=bias(ks[3], n_out),
        g2=gamma(ks[4], n_out), bt2=beta(ks[5], n_out),
        w_l1b=conv_w(ks[6], 1, n_out, n_out), b_l1b=bias(ks[7], n_out),
        # line2
        w_l2=conv_w(ks[8], 1, n_in, n_out), b_l2=bias(ks[9], n_out),
        # line3
        g3=gamma(ks[10], n_out), bt3=beta(ks[11], n_out),
        w_l3a=conv_w(ks[12], 3, n_out, n_out), b_l3a=bias(ks[13], n_out),
        g4=gamma(ks[14], n_out), bt4=beta(ks[15], n_out),
        w_l3b=conv_w(ks[16], 3, n_out, n_out), b_l3b=bias(ks[17], n_out),
    )


# ----------------------------------------------------------------------------
# Pure-JAX reference (mirrors PyTorch forward semantics) for validation
# ----------------------------------------------------------------------------
def _ref_conv(x, w_hwio, b, stride, pad):
    out = jax.lax.conv_general_dilated(
        x, w_hwio, (stride, stride), [(pad, pad), (pad, pad)],
        dimension_numbers=("NHWC", "HWIO", "NHWC"))
    return out + b


def _ref_bnrelu(x, gamma, beta, eps=EPS):
    mean = jnp.mean(x, axis=(0, 1, 2))
    var = jnp.var(x, axis=(0, 1, 2))
    return jnp.maximum((x - mean) / jnp.sqrt(var + eps) * gamma + beta, 0.0)


def res_down_reference(x_nchw, p):
    x = jnp.transpose(x_nchw, (0, 2, 3, 1)).astype(jnp.float32)
    x2 = _ref_conv(x, p["w_l2"], p["b_l2"], 2, 0)
    t = _ref_conv(_ref_bnrelu(x, p["g1"], p["bt1"]), p["w_l1a"], p["b_l1a"], 2, 2)
    x1 = _ref_conv(_ref_bnrelu(t, p["g2"], p["bt2"]), p["w_l1b"], p["b_l1b"], 1, 0)
    x3 = x1 + x2
    u = _ref_conv(_ref_bnrelu(x3, p["g3"], p["bt3"]), p["w_l3a"], p["b_l3a"], 1, 1)
    x4 = _ref_conv(_ref_bnrelu(u, p["g4"], p["bt4"]), p["w_l3b"], p["b_l3b"], 1, 1)
    return jnp.transpose(x3 + x4, (0, 3, 1, 2))


# ----------------------------------------------------------------------------
if __name__ == "__main__":
    key = jax.random.PRNGKey(0)
    kx, kp = jax.random.split(key)

    N, n_in, n_out, H, W = 2, 4, 8, 16, 16
    x = jax.random.normal(kx, (N, n_in, H, W), jnp.float32)   # PyTorch NCHW
    params = init_params(kp, n_in, n_out)

    out = res_down_forward(x, params)
    out = jax.block_until_ready(out)

    assert out.shape == (N, n_out, H // 2, W // 2), out.shape

    ref = res_down_reference(x, params)
    max_err = float(jnp.max(jnp.abs(out - ref)))
    assert max_err < 1e-3, f"mismatch vs reference: {max_err}"

    print("KERNEL_OK")
</pallas_src>

<mosaic_0001>
module attributes {stable_mosaic.version = 11 : i64} {
  func.func @_stats_kernel(%arg0: i32, %arg1: memref<1x8x8x16xf32, #tpu.memory_space<vmem>>, %arg2: memref<1x16xf32, #tpu.memory_space<vmem>>, %arg3: memref<1x16xf32, #tpu.memory_space<vmem>>) attributes {dimension_semantics = [#tpu.dimension_semantics<arbitrary>], iteration_bounds = array<i64: 2>, scalar_prefetch = 0 : i64, scratch_operands = 0 : i64, tpu.core_type = #tpu.core_type<tc>, window_params = [{transform_indices = @transform_0, window_bounds = array<i64: 1, 8, 8, 16>}, {pipeline_mode = #tpu.pipeline_mode<synchronous>, transform_indices = @transform_1, window_bounds = array<i64: 1, 16>}, {pipeline_mode = #tpu.pipeline_mode<synchronous>, transform_indices = @transform_2, window_bounds = array<i64: 1, 16>}]} {
    %c0_i32 = arith.constant 0 : i32
    %0 = arith.cmpi eq, %arg0, %c0_i32 : i32
    %1 = arith.extui %0 : i1 to i32
    %c0_i32_0 = arith.constant 0 : i32
    %2 = arith.cmpi ne, %1, %c0_i32_0 : i32
    scf.if %2 {
      %cst_13 = arith.constant 0.000000e+00 : f32
      %17 = vector.broadcast %cst_13 : f32 to vector<1x16xf32>
      %c0_14 = arith.constant 0 : index
      %c0_15 = arith.constant 0 : index
      %18 = vector.load %arg2[%c0_14, %c0_15] : memref<1x16xf32, #tpu.memory_space<vmem>>, vector<1x16xf32>
      tpu.vector_store %arg2[%c0_14, %c0_15], %17 {strides = array<i32>} : memref<1x16xf32, #tpu.memory_space<vmem>>, vector<1x16xf32>,
      %cst_16 = arith.constant 0.000000e+00 : f32
      %19 = vector.broadcast %cst_16 : f32 to vector<1x16xf32>
      %c0_17 = arith.constant 0 : index
      %c0_18 = arith.constant 0 : index
      %20 = vector.load %arg3[%c0_17, %c0_18] : memref<1x16xf32, #tpu.memory_space<vmem>>, vector<1x16xf32>
      tpu.vector_store %arg3[%c0_17, %c0_18], %19 {strides = array<i32>} : memref<1x16xf32, #tpu.memory_space<vmem>>, vector<1x16xf32>,
    } else {
    }
    %c0 = arith.constant 0 : index
    %c0_1 = arith.constant 0 : index
    %c0_2 = arith.constant 0 : index
    %c0_3 = arith.constant 0 : index
    %3 = vector.load %arg1[%c0, %c0_1, %c0_2, %c0_3] : memref<1x8x8x16xf32, #tpu.memory_space<vmem>>, vector<1x8x8x16xf32>
    %4 = vector.shape_cast %3 : vector<1x8x8x16xf32> to vector<8x8x16xf32>
    %5 = vector.shape_cast %4 : vector<8x8x16xf32> to vector<64x16xf32>
    %c0_4 = arith.constant 0 : index
    %c0_5 = arith.constant 0 : index
    %6 = vector.load %arg2[%c0_4, %c0_5] : memref<1x16xf32, #tpu.memory_space<vmem>>, vector<1x16xf32>
    %cst = arith.constant dense<0.000000e+00> : vector<16xf32>
    %7 = vector.multi_reduction <add>, %5, %cst [0] : vector<64x16xf32> to vector<16xf32>
    %8 = vector.shape_cast %7 : vector<16xf32> to vector<1x16xf32>
    %9 = arith.addf %6, %8 : vector<1x16xf32>
    %c0_6 = arith.constant 0 : index
    %c0_7 = arith.constant 0 : index
    %10 = vector.load %arg2[%c0_6, %c0_7] : memref<1x16xf32, #tpu.memory_space<vmem>>, vector<1x16xf32>
    tpu.vector_store %arg2[%c0_6, %c0_7], %9 {strides = array<i32>} : memref<1x16xf32, #tpu.memory_space<vmem>>, vector<1x16xf32>,
    %c0_8 = arith.constant 0 : index
    %c0_9 = arith.constant 0 : index
    %11 = vector.load %arg3[%c0_8, %c0_9] : memref<1x16xf32, #tpu.memory_space<vmem>>, vector<1x16xf32>
    %12 = arith.mulf %5, %5 : vector<64x16xf32>
    %cst_10 = arith.constant dense<0.000000e+00> : vector<16xf32>
    %13 = vector.multi_reduction <add>, %12, %cst_10 [0] : vector<64x16xf32> to vector<16xf32>
    %14 = vector.shape_cast %13 : vector<16xf32> to vector<1x16xf32>
    %15 = arith.addf %11, %14 : vector<1x16xf32>
    %c0_11 = arith.constant 0 : index
    %c0_12 = arith.constant 0 : index
    %16 = vector.load %arg3[%c0_11, %c0_12] : memref<1x16xf32, #tpu.memory_space<vmem>>, vector<1x16xf32>
    tpu.vector_store %arg3[%c0_11, %c0_12], %15 {strides = array<i32>} : memref<1x16xf32, #tpu.memory_space<vmem>>, vector<1x16xf32>,
    return
  }
  func.func @transform_0(%arg0: i32) -> (i32, i32, i32, i32) {
    %c0_i32 = arith.constant 0 : i32
    %c0_i32_0 = arith.constant 0 : i32
    %c0_i32_1 = arith.constant 0 : i32
    %c0_i32_2 = arith.constant 0 : i32
    return %arg0, %c0_i32, %c0_i32_0, %c0_i32_1 : i32, i32, i32, i32
  }
  func.func @transform_1(%arg0: i32) -> (i32, i32) {
    %c0_i32 = arith.constant 0 : i32
    %c0_i32_0 = arith.constant 0 : i32
    %c0_i32_1 = arith.constant 0 : i32
    return %c0_i32, %c0_i32_0 : i32, i32
  }
  func.func @transform_2(%arg0: i32) -> (i32, i32) {
    %c0_i32 = arith.constant 0 : i32
    %c0_i32_0 = arith.constant 0 : i32
    %c0_i32_1 = arith.constant 0 : i32
    return %c0_i32, %c0_i32_0 : i32, i32
  }
}

</mosaic_0001>

<llo_original>
// kernel: tpu_custom_call.1
$region0: #{tpu_custom_call.1}
  #allocation0 [shape = 'u32[]', space=smem, size = 0x4, offset = 0x4, fixed_abs, tag = 'smem constant byte address 0x4 - core index']
  #allocation1 [shape = 'u32[144,128]{1,0:T(1,128)}', space=vmem, size = 0x12000, scoped, tag = 'internal scratch']
  %s0 = inlined_call_operand.hbm [shape: f32[2,8,8,16], index: 0, kind: input, shape index: {}]
  %s1 = inlined_call_operand.hbm [shape: f32[1,16], index: 1, kind: output, shape index: {0}]
  %s2 = inlined_call_operand.hbm [shape: f32[1,16], index: 2, kind: output, shape index: {1}]
  %3 = xla_tuple %s1, %s2
  %s4 = sld [smem:[#allocation0]]
  $region53: #{tpu_custom_call.1} parent=0
    _
  %s6 = ssub.s32 1, %s4
  %s7 = scalar_select 0, %s6, %s4
  $region1: #{tpu_custom_call.1} parent=0
    #allocation2 [shape = 'u8[65536]{0}', space=vmem, size = 0x10000, scoped, tag = 'input window, operand 0']
    #allocation3 [shape = 's32[2]{0}', space=sflag, size = 0x8, scoped, tag = 'scoped memory for tpu_custom_call.1']
    #allocation4 [shape = 's32[2]{0}', space=sflag, size = 0x8, scoped, tag = 'scoped memory for tpu_custom_call.1']
    #allocation5 [shape = 'u8[512]{0}', space=vmem, size = 0x400, scoped, tag = 'output window, operand 0, single buffered']
    #allocation6 [shape = 'u8[512]{0}', space=vmem, size = 0x400, scoped, tag = 'output window, operand 1, single buffered']
    #allocation7 [shape = 's32[1]{0}', space=sflag, size = 0x4, scoped, tag = 'scoped memory for tpu_custom_call.1']
    %8 = vsyncpa [#allocation3], 0
    %s9 = scalar_lea.sflag [#allocation3], 1
    %10 = vsyncpa %s9, 0
    %11 = vsyncpa [#allocation4], 0
    %12 = vsyncpa [#allocation7], 0
    loop: start=0, step=1, limit=4
    $region2: #{tpu_custom_call.1} parent=1 // loop_pre_header
      _
    $region3: #{tpu_custom_call.1} parent=1 // loop_header
      %s14 = sphi 0, %s18
      %p15 = scmp.ge.s32.totalorder %s14, 4
      %s24 = sphi 0, %s26
      %s27 = sphi 0, %s24
      %s28 = sphi 0, %s27
      %s44 = sphi 0, %s28
      %s48 = sphi 0, %s48
      %s50 = sphi 0, %s48
      %s51 = sphi 0, %s50
      %s65 = sphi 0, %s51
      %s69 = sphi 0, %s69
      %s71 = sphi 0, %s69
      %s72 = sphi 0, %s71
      %s86 = sphi 0, %s72
    $region4: #{tpu_custom_call.1} parent=1 // loop_header_branch
      %17 = sbr.rel (%p15) target = $region8
    $region5: #{tpu_custom_call.1} parent=1 // loop_body
      %s19 = ssub.s32 %s14, 1
      %s20 = ssub.s32 %s14, 2
      %s21 = sadd.s32 %s14, 1
      %s22 = ssub.s32 %s14, %s21
      %p23 = scmp.eq.s32.totalorder %s22, 0
      %s25 = sadd.s32 %s24, 1
      %s26 = scalar_select %p23, %s24, %s25
      %p29 = pneg %p23
      %p30 = scmp.eq.s32.totalorder %s14, 1
      %p31 = por %p29, %p30
      %p32 = scmp.ne.s32.totalorder %s24, %s27
      %p33 = scmp.eq.s32.totalorder %s14, 0
      %p34 = por %p32, %p33
      %p35 = scmp.ne.s32.totalorder %s24, %s27
      %p36 = scmp.eq.s32.totalorder %s19, 1
      %p37 = por %p35, %p36
      %p38 = scmp.ne.s32.totalorder %s27, %s28
      %p39 = scmp.eq.s32.totalorder %s19, 0
      %p40 = por %p38, %p39
      %p41 = scmp.ne.s32.totalorder %s27, %s28
      %p42 = scmp.eq.s32.totalorder %s20, 1
      %p43 = por %p41, %p42
      %p45 = scmp.ne.s32.totalorder %s28, %s44
      %p46 = scmp.eq.s32.totalorder %s20, 0
      %p47 = por %p45, %p46
      %s49 = sadd.s32 %s48, 1
      %p52 = scmp.eq.s32.totalorder %s14, 1
      %p53 = scmp.ne.s32.totalorder %s48, %s50
      %p54 = scmp.eq.s32.totalorder %s14, 0
      %p55 = por %p53, %p54
      %p56 = scmp.ne.s32.totalorder %s48, %s50
      %p57 = scmp.eq.s32.totalorder %s19, 1
      %p58 = por %p56, %p57
      %p59 = scmp.ne.s32.totalorder %s50, %s51
      %p60 = scmp.eq.s32.totalorder %s19, 0
      %p61 = por %p59, %p60
      %p62 = scmp.ne.s32.totalorder %s50, %s51
      %p63 = scmp.eq.s32.totalorder %s20, 1
      %p64 = por %p62, %p63
      %p66 = scmp.ne.s32.totalorder %s51, %s65
      %p67 = scmp.eq.s32.totalorder %s20, 0
      %p68 = por %p66, %p67
      %s70 = sadd.s32 %s69, 1
      %p73 = scmp.eq.s32.totalorder %s14, 1
      %p74 = scmp.ne.s32.totalorder %s69, %s71
      %p75 = scmp.eq.s32.totalorder %s14, 0
      %p76 = por %p74, %p75
      %p77 = scmp.ne.s32.totalorder %s69, %s71
      %p78 = scmp.eq.s32.totalorder %s19, 1
      %p79 = por %p77, %p78
      %p80 = scmp.ne.s32.totalorder %s71, %s72
      %p81 = scmp.eq.s32.totalorder %s19, 0
      %p82 = por %p80, %p81
      %p83 = scmp.ne.s32.totalorder %s71, %s72
      %p84 = scmp.eq.s32.totalorder %s20, 1
      %p85 = por %p83, %p84
      %p87 = scmp.ne.s32.totalorder %s72, %s86
      %p88 = scmp.eq.s32.totalorder %s20, 0
      %p89 = por %p87, %p88
      %p90 = scmp.le.s32.totalorder 1, %s14
      %p91 = scmp.lt.s32.totalorder %s14, 3
      %p92 = pnand %p90, %p91
      %p93 = pneg %p92
      // Predicated region
      $region9: #{tpu_custom_call.1} parent=5 // pred_check
        _
      $region10: #{tpu_custom_call.1} parent=5 // pred_check_branch
        %95 = sbr.rel (%p92) target = $region12
      $region11: #{tpu_custom_call.1} parent=5 // pred_region
        %s96 = ssub.s32 %s14, 1
      $region12: #{tpu_custom_call.1} parent=5 // pred_fallthru
        _
      %p97 = scmp.lt.s32.totalorder %s14, 2
      // Predicated region
      $region13: #{tpu_custom_call.1} parent=5 // pred_check
        %p98 = pneg %p97
      $region14: #{tpu_custom_call.1} parent=5 // pred_check_branch
        %100 = sbr.rel (%p98) target = $region16
      $region15: #{tpu_custom_call.1} parent=5 // pred_region
        // Predicated region
        $region17: #{tpu_custom_call.1} parent=15 // pred_check
          %p101 = pneg %p34
        $region18: #{tpu_custom_call.1} parent=15 // pred_check_branch
          %103 = sbr.rel (%p101) target = $region20
        $region19: #{tpu_custom_call.1} parent=15 // pred_region
          %s104 = sand.u32 %s24, 1
          %s105 = scalar_lea.sflag [#allocation3], %s104
          %s106 = sand.u32 %s24, 1
          %s107 = smul.addr %s106, 64
          %s108 = scalar_lea.vmem [#allocation2], %s107
          %s110 = ssub.s32 1024, 1024
          %111 = vsyncadd %s105, %s110
          %s112 = smul.addr %s14, 8
          %s113 = smul.addr %s112, 128
          %s114 = scalar_lea.hbm %s0, %s113
          %s115 = sshll.u32 %s108, 4
          %s116 = int_to_ptr.vmem [resolvable:$true] %s115
          %121 = dma.hbm_to_vmem [thread:$0]  %s114, 1024, %s116, %s105, 128, 128, 8
        $region20: #{tpu_custom_call.1} parent=15 // pred_fallthru
          _
      $region16: #{tpu_custom_call.1} parent=5 // pred_fallthru
        _
      %p122 = scmp.le.s32.totalorder 1, %s14
      %p123 = scmp.lt.s32.totalorder %s14, 3
      %p124 = pnand %p122, %p123
      %p125 = pneg %p124
      // Predicated region
      $region21: #{tpu_custom_call.1} parent=5 // pred_check
        _
      $region22: #{tpu_custom_call.1} parent=5 // pred_check_branch
        %127 = sbr.rel (%p124) target = $region24
      $region23: #{tpu_custom_call.1} parent=5 // pred_region
        %s128 = ssub.s32 %s14, 1
        %s129 = sand.u32 %s27, 1
        %s130 = scalar_lea.sflag [#allocation3], %s129
        %s131 = sand.u32 %s27, 1
        %s132 = smul.addr %s131, 64
        %s133 = scalar_lea.vmem [#allocation2], %s132
        // Predicated region
        $region25: #{tpu_custom_call.1} parent=23 // pred_check
          %p134 = pneg %p40
        $region26: #{tpu_custom_call.1} parent=23 // pred_check_branch
          %136 = sbr.rel (%p134) target = $region28
        $region27: #{tpu_custom_call.1} parent=23 // pred_region
          %137 = dma.done %s130, 1024
        $region28: #{tpu_custom_call.1} parent=23 // pred_fallthru
          _
        %s138 = sand.u32 %s27, 1
        %s139 = scalar_lea.sflag [#allocation3], %s138
        %s140 = sand.u32 %s27, 1
        %s141 = smul.addr %s140, 64
        %s142 = scalar_lea.vmem [#allocation2], %s141
        %p143 = pneg %p40
        %p144 = pneg %p37
        %p145 = pneg %p61
        %p146 = pneg %p58
        %p147 = pneg %p82
        %p148 = pneg %p79
        %p149 = scmp.eq.s32.totalorder %s19, 0
        // Predicated region
        $region29: #{tpu_custom_call.1} parent=23 // pred_check
          %p150 = pneg %p149
        $region30: #{tpu_custom_call.1} parent=23 // pred_check_branch
          %152 = sbr.rel (%p150) target = $region32
        $region31: #{tpu_custom_call.1} parent=23 // pred_region
          %vm153 = vcmask 122880
          %154 = vst.msk [vmem:[#allocation5] sm:$0x1] %vm153, 0.0
          %155 = vst.msk [vmem:[#allocation6] sm:$0x1] %vm153, 0.0
        $region32: #{tpu_custom_call.1} parent=23 // pred_fallthru
          _
        %v156 = vld [vmem:[%s133] sm:$0xff]
        %v157 = vld [vmem:[%s133 + $0x8] sm:$0xff]
        %v158 = vld [vmem:[%s133 + $0x10] sm:$0xff]
        %v159 = vld [vmem:[%s133 + $0x18] sm:$0xff]
        %v160 = vld [vmem:[%s133 + $0x20] sm:$0xff]
        %v161 = vld [vmem:[%s133 + $0x28] sm:$0xff]
        %v162 = vld [vmem:[%s133 + $0x30] sm:$0xff]
        %v163 = vld [vmem:[%s133 + $0x38] sm:$0xff]
        %v164 = vld [vmem:[#allocation5] sm:$0x1]
        %vm165 = vcmask 130048
        %v166 = vsel %vm165, %v156, 0.0
        %v167 = vsel %vm165, %v157, 0.0
        %v168 = vadd.f32 %v166, %v167
        %v169 = vsel %vm165, %v158, 0.0
        %v170 = vadd.f32 %v168, %v169
        %v171 = vsel %vm165, %v159, 0.0
        %v172 = vadd.f32 %v170, %v171
        %v173 = vsel %vm165, %v160, 0.0
        %v174 = vadd.f32 %v172, %v173
        %v175 = vsel %vm165, %v161, 0.0
        %v176 = vadd.f32 %v174, %v175
        %v177 = vsel %vm165, %v162, 0.0
        %v178 = vadd.f32 %v176, %v177
        %v179 = vsel %vm165, %v163, 0.0
        %v180 = vadd.f32 %v178, %v179
        %v181 = vrot.slane %v180, 4
        %v182 = vadd.f32 %v180, %v181
        %v183 = vrot.slane %v182, 2
        %v184 = vadd.f32 %v182, %v183
        %v185 = vrot.slane %v184, 1
        %v186 = vadd.f32 %v184, %v185
        %v187 = vadd.f32 %v164, %v186
        %vm188 = vcmask 122880
        %189 = vst.msk [vmem:[#allocation5] sm:$0x1] %vm188, %v187
        %v190 = vld [vmem:[#allocation6] sm:$0x1]
        %v191 = vmul.f32 %v156, %v156
        %v192 = vmul.f32 %v157, %v157
        %v193 = vmul.f32 %v158, %v158
        %v194 = vmul.f32 %v159, %v159
        %v195 = vmul.f32 %v160, %v160
        %v196 = vmul.f32 %v161, %v161
        %v197 = vmul.f32 %v162, %v162
        %v198 = vmul.f32 %v163, %v163
        %v199 = vsel %vm165, %v191, 0.0
        %v200 = vsel %vm165, %v192, 0.0
        %v201 = vadd.f32 %v199, %v200
        %v202 = vsel %vm165, %v193, 0.0
        %v203 = vadd.f32 %v201, %v202
        %v204 = vsel %vm165, %v194, 0.0
        %v205 = vadd.f32 %v203, %v204
        %v206 = vsel %vm165, %v195, 0.0
        %v207 = vadd.f32 %v205, %v206
        %v208 = vsel %vm165, %v196, 0.0
        %v209 = vadd.f32 %v207, %v208
        %v210 = vsel %vm165, %v197, 0.0
        %v211 = vadd.f32 %v209, %v210
        %v212 = vsel %vm165, %v198, 0.0
        %v213 = vadd.f32 %v211, %v212
        %v214 = vrot.slane %v213, 4
        %v215 = vadd.f32 %v213, %v214
        %v216 = vrot.slane %v215, 2
        %v217 = vadd.f32 %v215, %v216
        %v218 = vrot.slane %v217, 1
        %v219 = vadd.f32 %v217, %v218
        %v220 = vadd.f32 %v190, %v219
        %221 = vst.msk [vmem:[#allocation6] sm:$0x1] %vm188, %v220
        // Predicated region
        $region33: #{tpu_custom_call.1} parent=23 // pred_check
          %p222 = pneg %p58
        $region34: #{tpu_custom_call.1} parent=23 // pred_check_branch
          %224 = sbr.rel (%p222) target = $region36
        $region35: #{tpu_custom_call.1} parent=23 // pred_region
          %s226 = ssub.s32 16, 16
          %227 = vsyncadd [#allocation4], %s226
          %s229 = sshll.u32 [#allocation5], 4
          %s230 = int_to_ptr.vmem [resolvable:$true] %s229
          %232 = dma.vmem_to_hbm [thread:$0]  %s230, 16, %s1, [#allocation4]
        $region36: #{tpu_custom_call.1} parent=23 // pred_fallthru
          _
        // Predicated region
        $region37: #{tpu_custom_call.1} parent=23 // pred_check
          %p233 = pneg %p79
        $region38: #{tpu_custom_call.1} parent=23 // pred_check_branch
          %235 = sbr.rel (%p233) target = $region40
        $region39: #{tpu_custom_call.1} parent=23 // pred_region
          %s237 = ssub.s32 16, 16
          %238 = vsyncadd [#allocation7], %s237
          %s240 = sshll.u32 [#allocation6], 4
          %s241 = int_to_ptr.vmem [resolvable:$true] %s240
          %243 = dma.vmem_to_hbm [thread:$0]  %s241, 16, %s2, [#allocation7]
        $region40: #{tpu_custom_call.1} parent=23 // pred_fallthru
          _
        // Predicated region
        $region41: #{tpu_custom_call.1} parent=23 // pred_check
          %p244 = pneg %p58
        $region42: #{tpu_custom_call.1} parent=23 // pred_check_branch
          %246 = sbr.rel (%p244) target = $region44
        $region43: #{tpu_custom_call.1} parent=23 // pred_region
          %247 = dma.done [#allocation4], 16
        $region44: #{tpu_custom_call.1} parent=23 // pred_fallthru
          _
        // Predicated region
        $region45: #{tpu_custom_call.1} parent=23 // pred_check
          %p248 = pneg %p79
        $region46: #{tpu_custom_call.1} parent=23 // pred_check_branch
          %250 = sbr.rel (%p248) target = $region48
        $region47: #{tpu_custom_call.1} parent=23 // pred_region
          %251 = dma.done [#allocation7], 16
        $region48: #{tpu_custom_call.1} parent=23 // pred_fallthru
          _
      $region24: #{tpu_custom_call.1} parent=5 // pred_fallthru
        _
      %p252 = scmp.le.s32.totalorder 2, %s14
      // Predicated region
      $region49: #{tpu_custom_call.1} parent=5 // pred_check
        %p253 = pneg %p252
      $region50: #{tpu_custom_call.1} parent=5 // pred_check_branch
        %255 = sbr.rel (%p253) target = $region52
      $region51: #{tpu_custom_call.1} parent=5 // pred_region
        %s256 = ssub.s32 %s14, 2
      $region52: #{tpu_custom_call.1} parent=5 // pred_fallthru
        _
    $region6: #{tpu_custom_call.1} parent=1 // loop_footer
      %s18 = sadd.s32 1, %s14
    $region7: #{tpu_custom_call.1} parent=1 // loop_footer_branch
      %13 = sbr.rel target = $region3
    $region8: #{tpu_custom_call.1} parent=1 // loop_exit
      _
    %257 = vsyncpa [#allocation3], 1
    %s258 = scalar_lea.sflag [#allocation3], 1
    %259 = vsyncpa %s258, 1
    %260 = vsyncpa [#allocation4], 1
    %s261 = scalar_lea.sflag [#allocation4], 1
    %262 = vsyncpa %s261, 1
    %263 = vsyncpa [#allocation7], 1

</llo_original>
